<compile_context>
chip_gen: v7x
topology: tpu7x:2x2x1
jax: 0.10.0
libtpu: 0.0.40
codegen_flags: <defaults>
</compile_context>

<pallas_src>
import functools

import jax
import jax.numpy as jnp
from jax.experimental import pallas as pl
from jax.experimental.pallas import tpu as pltpu


# ----------------------------------------------------------------------------
# Fused kernel (one grid step = NB images)
#   p_ref     : [NB, H*W, 9*C_in]     bf16  lane-dense im2col patches
#   w_ref     : [9*C_in, C_out_pad]   bf16  conv weight (zero-padded)
#   b_ref     : [1, C_out_pad]        f32   conv bias   (zero-padded)
#   wc_ref    : [C_out_pad, NC_pad]   f32   classifier weight (zero-padded)
#   bc_ref    : [1, NC_pad]           f32   classifier bias   (zero-padded)
#   feat_ref  : [NB, 1, C_out_pad]    f32   pooled features (BaselineTrain "out")
#   scores_ref: [NB, 1, NC_pad]       f32   classifier scores
# ----------------------------------------------------------------------------
def _fused_kernel(p_ref, w_ref, b_ref, wc_ref, bc_ref,
                  feat_ref, scores_ref, *, NB, HW, inv_hw):
    c_out_pad = w_ref.shape[-1]

    # Single K = 9*C_in conv matmul for all NB images (bf16 x bf16 -> f32 acc).
    x = p_ref[...].reshape(NB * HW, -1)                       # [NB*HW, 9*C_in]
    conv = jnp.dot(x, w_ref[...], preferred_element_type=jnp.float32)
    conv = jnp.maximum(conv + b_ref[...], 0.0)                # bias + ReLU (f32)

    # Per-image global average pool (features returned by BaselineTrain.forward).
    pooled = jnp.sum(conv.reshape(NB, HW, c_out_pad), axis=1) * inv_hw  # [NB, C]
    feat_ref[...] = pooled[:, None, :]

    # Linear classifier head (M = NB).
    scores = jnp.dot(pooled, wc_ref[...],
                     preferred_element_type=jnp.float32) + bc_ref[...]
    scores_ref[...] = scores[:, None, :]


def _pick_nb(N, HW, K, c_out_pad, nc_pad, vmem_budget_bytes=16 * 1024 * 1024):
    """Images per grid step: amortize ~0.35us/step overhead, keep >=2 grid steps
    so both v7x TensorCores get work, and stay under a conservative VMEM byte
    budget (portable down to v7x's 64 MiB / 32 MiB default scoped VMEM)."""
    def step_bytes(nb):
        return (2 * nb * HW * K * 2              # bf16 patches block, x2 buffers
                + nb * HW * c_out_pad * 4        # f32 conv intermediate
                + 2 * nb * (c_out_pad + nc_pad) * 4)  # f32 outputs, x2 buffers
    nb = max(1, N // 2)                          # >= 2 grid steps when N >= 2
    while nb > 1 and (N % nb != 0 or step_bytes(nb) > vmem_budget_bytes):
        nb -= 1
    return nb


def baseline_train_forward(x_nchw, w_conv, b_conv, w_cls, b_cls):
    """Forward pass of BaselineTrain: returns (features, scores)."""
    N, C_in, H, W = x_nchw.shape
    C_out = w_conv.shape[0]
    num_class = w_cls.shape[0]

    HW = H * W
    K = 9 * C_in
    LANE = 128
    c_out_pad = -(-C_out // LANE) * LANE         # lane-dense outputs
    nc_pad = -(-num_class // LANE) * LANE

    # --- wrapper-side layout plumbing (lane-dense im2col slab) ---------------
    # NCHW -> NHWC, cast bf16, zero-pad spatially for SAME 3x3 conv, then
    # concatenate the 9 shifted taps along the channel axis -> [N, H*W, 9*C_in].
    x_nhwc = jnp.transpose(x_nchw, (0, 2, 3, 1)).astype(jnp.bfloat16)
    xp = jnp.pad(x_nhwc, ((0, 0), (1, 1), (1, 1), (0, 0)))
    taps = [xp[:, dy:dy + H, dx:dx + W, :] for dy in range(3) for dx in range(3)]
    patches = jnp.concatenate(taps, axis=-1).reshape(N, HW, K)   # bf16

    # Conv weight OIHW -> [(dy, dx, c_in), C_out] matching the tap ordering.
    wk = jnp.transpose(w_conv, (2, 3, 1, 0)).reshape(K, C_out)
    wk = jnp.pad(wk, ((0, 0), (0, c_out_pad - C_out))).astype(jnp.bfloat16)
    bk = jnp.pad(b_conv.reshape(1, C_out),
                 ((0, 0), (0, c_out_pad - C_out))).astype(jnp.float32)

    # Classifier: PyTorch Linear stores weight [num_class, C_out]; scores = f @ W.T + b.
    wc = jnp.pad(jnp.transpose(w_cls, (1, 0)),
                 ((0, c_out_pad - C_out), (0, nc_pad - num_class))).astype(jnp.float32)
    bc = jnp.pad(b_cls.reshape(1, num_class),
                 ((0, 0), (0, nc_pad - num_class))).astype(jnp.float32)

    NB = _pick_nb(N, HW, K, c_out_pad, nc_pad)
    grid = (N // NB,)

    kernel = functools.partial(_fused_kernel, NB=NB, HW=HW, inv_hw=1.0 / HW)

    feat_p, scores_p = pl.pallas_call(
        kernel,
        out_shape=(
            jax.ShapeDtypeStruct((N, 1, c_out_pad), jnp.float32),
            jax.ShapeDtypeStruct((N, 1, nc_pad), jnp.float32),
        ),
        grid_spec=pltpu.PrefetchScalarGridSpec(
            num_scalar_prefetch=0,
            grid=grid,
            in_specs=[
                # NB images of im2col patches per grid step.
                pl.BlockSpec((NB, HW, K), lambda n: (n, 0, 0)),
                # Constant weight blocks: single-buffered (never re-fetched).
                pl.BlockSpec((K, c_out_pad), lambda n: (0, 0),
                             pipeline_mode=pl.Buffered(1)),
                pl.BlockSpec((1, c_out_pad), lambda n: (0, 0),
                             pipeline_mode=pl.Buffered(1)),
                pl.BlockSpec((c_out_pad, nc_pad), lambda n: (0, 0),
                             pipeline_mode=pl.Buffered(1)),
                pl.BlockSpec((1, nc_pad), lambda n: (0, 0),
                             pipeline_mode=pl.Buffered(1)),
            ],
            out_specs=(
                pl.BlockSpec((NB, 1, c_out_pad), lambda n: (n, 0, 0)),
                pl.BlockSpec((NB, 1, nc_pad), lambda n: (n, 0, 0)),
            ),
        ),
        compiler_params=pltpu.CompilerParams(
            dimension_semantics=("parallel",)),
    )(patches, wk, bk, wc, bc)

    feat = feat_p[:, 0, :C_out]
    scores = scores_p[:, 0, :num_class]
    return feat, scores


if __name__ == "__main__":
    # Small shapes consistent with an NCHW image input.
    N, C_in, H, W = 2, 4, 16, 16
    C_out = 32          # final_feat_dim of the synthetic backbone
    num_class = 10

    key = jax.random.PRNGKey(0)
    k_x, k_wc, k_bc, k_wl = jax.random.split(key, 4)

    x = jax.random.normal(k_x, (N, C_in, H, W), dtype=jnp.float32)

    # Backbone conv params (deterministic).
    w_conv = jax.random.normal(k_wc, (C_out, C_in, 3, 3), dtype=jnp.float32) * 0.1
    b_conv = jax.random.normal(k_bc, (C_out,), dtype=jnp.float32) * 0.1

    # Classifier: nn.Linear(final_feat_dim, num_class), bias filled with 0.
    w_cls = jax.random.normal(k_wl, (num_class, C_out), dtype=jnp.float32) * 0.1
    b_cls = jnp.zeros((num_class,), dtype=jnp.float32)

    fwd = jax.jit(baseline_train_forward)
    feat, scores = fwd(x, w_conv, b_conv, w_cls, b_cls)
    jax.block_until_ready((feat, scores))

    # ---- pure-JAX reference (conv done with the same bf16-rounded operands) ----
    x_b = x.astype(jnp.bfloat16).astype(jnp.float32)
    w_b = w_conv.astype(jnp.bfloat16).astype(jnp.float32)
    x_nhwc = jnp.transpose(x_b, (0, 2, 3, 1))
    xpad = jnp.pad(x_nhwc, ((0, 0), (1, 1), (1, 1), (0, 0)))
    w9_ref = jnp.transpose(w_b, (2, 3, 1, 0))                   # [3,3,C_in,C_out]
    ref_conv = jnp.zeros((N, H, W, C_out), jnp.float32)
    for dy in range(3):
        for dx in range(3):
            ref_conv = ref_conv + jnp.einsum(
                "nhwc,cd->nhwd", xpad[:, dy:dy + H, dx:dx + W, :], w9_ref[dy, dx])
    ref_conv = jnp.maximum(ref_conv + b_conv, 0.0)
    ref_feat = jnp.mean(ref_conv.reshape(N, H * W, C_out), axis=1)
    ref_scores = ref_feat @ w_cls.T + b_cls

    assert feat.shape == (N, C_out) and scores.shape == (N, num_class)
    assert jnp.allclose(feat, ref_feat, atol=1e-2, rtol=1e-2)
    assert jnp.allclose(scores, ref_scores, atol=1e-2, rtol=1e-2)

    # TODO(synk): forward_loss / train_loop / test_loop (CrossEntropyLoss + optimizer
    # loop) are host-side training utilities, not kernel work; only forward() is
    # implemented here.
    print("KERNEL_OK")
</pallas_src>

<mosaic_0001>
module attributes {stable_mosaic.version = 11 : i64} {
  func.func @_fused_kernel(%arg0: i32, %arg1: memref<1x256x36xbf16, #tpu.memory_space<vmem>>, %arg2: memref<36x128xbf16, #tpu.memory_space<vmem>>, %arg3: memref<1x128xf32, #tpu.memory_space<vmem>>, %arg4: memref<128x128xf32, #tpu.memory_space<vmem>>, %arg5: memref<1x128xf32, #tpu.memory_space<vmem>>, %arg6: memref<1x1x128xf32, #tpu.memory_space<vmem>>, %arg7: memref<1x1x128xf32, #tpu.memory_space<vmem>>) attributes {dimension_semantics = [#tpu.dimension_semantics<parallel>], iteration_bounds = array<i64: 2>, scalar_prefetch = 0 : i64, scratch_operands = 0 : i64, tpu.core_type = #tpu.core_type<tc>, window_params = [{transform_indices = @transform_0, window_bounds = array<i64: 1, 256, 36>}, {pipeline_mode = #tpu.pipeline_mode<synchronous>, transform_indices = @transform_1, window_bounds = array<i64: 36, 128>}, {pipeline_mode = #tpu.pipeline_mode<synchronous>, transform_indices = @transform_2, window_bounds = array<i64: 1, 128>}, {pipeline_mode = #tpu.pipeline_mode<synchronous>, transform_indices = @transform_3, window_bounds = array<i64: 128, 128>}, {pipeline_mode = #tpu.pipeline_mode<synchronous>, transform_indices = @transform_4, window_bounds = array<i64: 1, 128>}, {transform_indices = @transform_5, window_bounds = array<i64: 1, 1, 128>}, {transform_indices = @transform_6, window_bounds = array<i64: 1, 1, 128>}]} {
    %c0 = arith.constant 0 : index
    %c0_0 = arith.constant 0 : index
    %c0_1 = arith.constant 0 : index
    %0 = vector.load %arg1[%c0, %c0_0, %c0_1] : memref<1x256x36xbf16, #tpu.memory_space<vmem>>, vector<1x256x36xbf16>
    %1 = vector.shape_cast %0 : vector<1x256x36xbf16> to vector<256x36xbf16>
    %c0_2 = arith.constant 0 : index
    %c0_3 = arith.constant 0 : index
    %2 = vector.load %arg2[%c0_2, %c0_3] : memref<36x128xbf16, #tpu.memory_space<vmem>>, vector<36x128xbf16>
    %cst = arith.constant dense<0.000000e+00> : vector<256x128xf32>
    %3 = tpu.matmul %1, %2, %cst {dimension_numbers = #tpu.dot_dimension_numbers<[1], [0], [0], [1], [0, 0, 1, 1], [], []>} : vector<256x36xbf16>, vector<36x128xbf16>, vector<256x128xf32> -> vector<256x128xf32>
    %c0_4 = arith.constant 0 : index
    %c0_5 = arith.constant 0 : index
    %4 = vector.load %arg3[%c0_4, %c0_5] : memref<1x128xf32, #tpu.memory_space<vmem>>, vector<1x128xf32>
    %5 = vector.broadcast %4 : vector<1x128xf32> to vector<256x128xf32>
    %6 = arith.addf %3, %5 : vector<256x128xf32>
    %cst_6 = arith.constant 0.000000e+00 : f32
    %7 = vector.broadcast %cst_6 : f32 to vector<256x128xf32>
    %8 = arith.maximumf %6, %7 : vector<256x128xf32>
    %9 = vector.shape_cast %8 : vector<256x128xf32> to vector<1x256x128xf32>
    %cst_7 = arith.constant dense<0.000000e+00> : vector<1x128xf32>
    %10 = vector.multi_reduction <add>, %9, %cst_7 [1] : vector<1x256x128xf32> to vector<1x128xf32>
    %cst_8 = arith.constant 3.906250e-03 : f32
    %11 = vector.broadcast %cst_8 : f32 to vector<1x128xf32>
    %12 = arith.mulf %10, %11 : vector<1x128xf32>
    %13 = vector.shape_cast %12 : vector<1x128xf32> to vector<1x1x128xf32>
    %c0_9 = arith.constant 0 : index
    %c0_10 = arith.constant 0 : index
    %c0_11 = arith.constant 0 : index
    %14 = vector.load %arg6[%c0_9, %c0_10, %c0_11] : memref<1x1x128xf32, #tpu.memory_space<vmem>>, vector<1x1x128xf32>
    tpu.vector_store %arg6[%c0_9, %c0_10, %c0_11], %13 {strides = array<i32>} : memref<1x1x128xf32, #tpu.memory_space<vmem>>, vector<1x1x128xf32>,
    %c0_12 = arith.constant 0 : index
    %c0_13 = arith.constant 0 : index
    %15 = vector.load %arg4[%c0_12, %c0_13] : memref<128x128xf32, #tpu.memory_space<vmem>>, vector<128x128xf32>
    %cst_14 = arith.constant dense<0.000000e+00> : vector<1x128xf32>
    %16 = tpu.matmul %12, %15, %cst_14 {dimension_numbers = #tpu.dot_dimension_numbers<[1], [0], [0], [1], [0, 0, 1, 1], [], []>} : vector<1x128xf32>, vector<128x128xf32>, vector<1x128xf32> -> vector<1x128xf32>
    %c0_15 = arith.constant 0 : index
    %c0_16 = arith.constant 0 : index
    %17 = vector.load %arg5[%c0_15, %c0_16] : memref<1x128xf32, #tpu.memory_space<vmem>>, vector<1x128xf32>
    %18 = arith.addf %16, %17 : vector<1x128xf32>
    %19 = vector.shape_cast %18 : vector<1x128xf32> to vector<1x1x128xf32>
    %c0_17 = arith.constant 0 : index
    %c0_18 = arith.constant 0 : index
    %c0_19 = arith.constant 0 : index
    %20 = vector.load %arg7[%c0_17, %c0_18, %c0_19] : memref<1x1x128xf32, #tpu.memory_space<vmem>>, vector<1x1x128xf32>
    tpu.vector_store %arg7[%c0_17, %c0_18, %c0_19], %19 {strides = array<i32>} : memref<1x1x128xf32, #tpu.memory_space<vmem>>, vector<1x1x128xf32>,
    return
  }
  func.func @transform_0(%arg0: i32) -> (i32, i32, i32) {
    %c0_i32 = arith.constant 0 : i32
    %c0_i32_0 = arith.constant 0 : i32
    %c0_i32_1 = arith.constant 0 : i32
    return %arg0, %c0_i32, %c0_i32_0 : i32, i32, i32
  }
  func.func @transform_1(%arg0: i32) -> (i32, i32) {
    %c0_i32 = arith.constant 0 : i32
    %c0_i32_0 = arith.constant 0 : i32
    %c0_i32_1 = arith.constant 0 : i32
    return %c0_i32, %c0_i32_0 : i32, i32
  }
  func.func @transform_2(%arg0: i32) -> (i32, i32) {
    %c0_i32 = arith.constant 0 : i32
    %c0_i32_0 = arith.constant 0 : i32
    %c0_i32_1 = arith.constant 0 : i32
    return %c0_i32, %c0_i32_0 : i32, i32
  }
  func.func @transform_3(%arg0: i32) -> (i32, i32) {
    %c0_i32 = arith.constant 0 : i32
    %c0_i32_0 = arith.constant 0 : i32
    %c0_i32_1 = arith.constant 0 : i32
    return %c0_i32, %c0_i32_0 : i32, i32
  }
  func.func @transform_4(%arg0: i32) -> (i32, i32) {
    %c0_i32 = arith.constant 0 : i32
    %c0_i32_0 = arith.constant 0 : i32
    %c0_i32_1 = arith.constant 0 : i32
    return %c0_i32, %c0_i32_0 : i32, i32
  }
  func.func @transform_5(%arg0: i32) -> (i32, i32, i32) {
    %c0_i32 = arith.constant 0 : i32
    %c0_i32_0 = arith.constant 0 : i32
    %c0_i32_1 = arith.constant 0 : i32
    return %arg0, %c0_i32, %c0_i32_0 : i32, i32, i32
  }
  func.func @transform_6(%arg0: i32) -> (i32, i32, i32) {
    %c0_i32 = arith.constant 0 : i32
    %c0_i32_0 = arith.constant 0 : i32
    %c0_i32_1 = arith.constant 0 : i32
    return %arg0, %c0_i32, %c0_i32_0 : i32, i32, i32
  }
}

</mosaic_0001>

<llo_original>
// kernel: baseline_train_forward.1
$region0: #{baseline_train_forward.1}
  #allocation0 [shape = 'u32[]', space=smem, size = 0x4, offset = 0x4, fixed_abs, tag = 'smem constant byte address 0x4 - core index']
  #allocation1 [shape = 'u32[144,128]{1,0:T(1,128)}', space=vmem, size = 0x12000, scoped, tag = 'internal scratch']
  %s0 = inlined_call_operand.vmem [shape: bf16[2,256,36], index: 0, kind: input, shape index: {}]
  %s1 = inlined_call_operand.vmem [shape: bf16[36,128], index: 1, kind: input, shape index: {}]
  %s2 = inlined_call_operand.vmem [shape: f32[1,128], index: 2, kind: input, shape index: {}]
  %s3 = inlined_call_operand.vmem [shape: f32[128,128], index: 3, kind: input, shape index: {}]
  %s4 = inlined_call_operand.vmem [shape: f32[1,128], index: 4, kind: input, shape index: {}]
  %s5 = inlined_call_operand.hbm [shape: f32[2,1,128], index: 5, kind: output, shape index: {0}]
  %s6 = inlined_call_operand.hbm [shape: f32[2,1,128], index: 6, kind: output, shape index: {1}]
  %7 = xla_tuple %s5, %s6
  %s8 = sld [smem:[#allocation0]]
  $region61: #{baseline_train_forward.1} parent=0
    _
  %s10 = ssub.s32 1, %s8
  %s11 = scalar_select 0, %s10, %s8
  $region1: #{baseline_train_forward.1} parent=0
    #allocation2 [shape = 'u8[1024]{0}', space=vmem, size = 0x400, scoped, tag = 'output window, operand 0']
    #allocation3 [shape = 's32[2]{0}', space=sflag, size = 0x8, scoped, tag = 'scoped memory for baseline_train_forward.1']
    #allocation4 [shape = 'u8[1024]{0}', space=vmem, size = 0x400, scoped, tag = 'output window, operand 1']
    #allocation5 [shape = 's32[2]{0}', space=sflag, size = 0x8, scoped, tag = 'scoped memory for baseline_train_forward.1']
    %12 = vsyncpa [#allocation3], 0
    %s13 = scalar_lea.sflag [#allocation3], 1
    %14 = vsyncpa %s13, 0
    %15 = vsyncpa [#allocation5], 0
    %s16 = scalar_lea.sflag [#allocation5], 1
    %17 = vsyncpa %s16, 0
    loop: start=0, step=1, limit=4
    $region2: #{baseline_train_forward.1} parent=1 // loop_pre_header
      _
    $region3: #{baseline_train_forward.1} parent=1 // loop_header
      %s19 = sphi 0, %s23
      %p20 = scmp.ge.s32.totalorder %s19, 4
      %s29 = sphi 0, %s31
      %s32 = sphi 0, %s29
      %s33 = sphi 0, %s32
      %s49 = sphi 0, %s33
      %s53 = sphi 0, %s53
      %s55 = sphi 0, %s53
      %s56 = sphi 0, %s55
      %s70 = sphi 0, %s56
      %s74 = sphi 0, %s74
      %s76 = sphi 0, %s74
      %s77 = sphi 0, %s76
      %s91 = sphi 0, %s77
      %s95 = sphi 0, %s95
      %s97 = sphi 0, %s95
      %s98 = sphi 0, %s97
      %s112 = sphi 0, %s98
      %s116 = sphi 0, %s116
      %s118 = sphi 0, %s116
      %s119 = sphi 0, %s118
      %s133 = sphi 0, %s119
      %s139 = sphi 0, %s141
      %s142 = sphi 0, %s139
      %s143 = sphi 0, %s142
      %s159 = sphi 0, %s143
      %s165 = sphi 0, %s167
      %s168 = sphi 0, %s165
      %s169 = sphi 0, %s168
      %s185 = sphi 0, %s169
    $region4: #{baseline_train_forward.1} parent=1 // loop_header_branch
      %22 = sbr.rel (%p20) target = $region8
    $region5: #{baseline_train_forward.1} parent=1 // loop_body
      %s24 = ssub.s32 %s19, 1
      %s25 = ssub.s32 %s19, 2
      %s26 = sadd.s32 %s19, 1
      %s27 = ssub.s32 %s19, %s26
      %p28 = scmp.eq.s32.totalorder %s27, 0
      %s30 = sadd.s32 %s29, 1
      %s31 = scalar_select %p28, %s29, %s30
      %p34 = pneg %p28
      %p35 = scmp.eq.s32.totalorder %s19, 1
      %p36 = por %p34, %p35
      %p37 = scmp.ne.s32.totalorder %s29, %s32
      %p38 = scmp.eq.s32.totalorder %s19, 0
      %p39 = por %p37, %p38
      %p40 = scmp.ne.s32.totalorder %s29, %s32
      %p41 = scmp.eq.s32.totalorder %s24, 1
      %p42 = por %p40, %p41
      %p43 = scmp.ne.s32.totalorder %s32, %s33
      %p44 = scmp.eq.s32.totalorder %s24, 0
      %p45 = por %p43, %p44
      %p46 = scmp.ne.s32.totalorder %s32, %s33
      %p47 = scmp.eq.s32.totalorder %s25, 1
      %p48 = por %p46, %p47
      %p50 = scmp.ne.s32.totalorder %s33, %s49
      %p51 = scmp.eq.s32.totalorder %s25, 0
      %p52 = por %p50, %p51
      %s54 = sadd.s32 %s53, 1
      %p57 = scmp.eq.s32.totalorder %s19, 1
      %p58 = scmp.ne.s32.totalorder %s53, %s55
      %p59 = scmp.eq.s32.totalorder %s19, 0
      %p60 = por %p58, %p59
      %p61 = scmp.ne.s32.totalorder %s53, %s55
      %p62 = scmp.eq.s32.totalorder %s24, 1
      %p63 = por %p61, %p62
      %p64 = scmp.ne.s32.totalorder %s55, %s56
      %p65 = scmp.eq.s32.totalorder %s24, 0
      %p66 = por %p64, %p65
      %p67 = scmp.ne.s32.totalorder %s55, %s56
      %p68 = scmp.eq.s32.totalorder %s25, 1
      %p69 = por %p67, %p68
      %p71 = scmp.ne.s32.totalorder %s56, %s70
      %p72 = scmp.eq.s32.totalorder %s25, 0
      %p73 = por %p71, %p72
      %s75 = sadd.s32 %s74, 1
      %p78 = scmp.eq.s32.totalorder %s19, 1
      %p79 = scmp.ne.s32.totalorder %s74, %s76
      %p80 = scmp.eq.s32.totalorder %s19, 0
      %p81 = por %p79, %p80
      %p82 = scmp.ne.s32.totalorder %s74, %s76
      %p83 = scmp.eq.s32.totalorder %s24, 1
      %p84 = por %p82, %p83
      %p85 = scmp.ne.s32.totalorder %s76, %s77
      %p86 = scmp.eq.s32.totalorder %s24, 0
      %p87 = por %p85, %p86
      %p88 = scmp.ne.s32.totalorder %s76, %s77
      %p89 = scmp.eq.s32.totalorder %s25, 1
      %p90 = por %p88, %p89
      %p92 = scmp.ne.s32.totalorder %s77, %s91
      %p93 = scmp.eq.s32.totalorder %s25, 0
      %p94 = por %p92, %p93
      %s96 = sadd.s32 %s95, 1
      %p99 = scmp.eq.s32.totalorder %s19, 1
      %p100 = scmp.ne.s32.totalorder %s95, %s97
      %p101 = scmp.eq.s32.totalorder %s19, 0
      %p102 = por %p100, %p101
      %p103 = scmp.ne.s32.totalorder %s95, %s97
      %p104 = scmp.eq.s32.totalorder %s24, 1
      %p105 = por %p103, %p104
      %p106 = scmp.ne.s32.totalorder %s97, %s98
      %p107 = scmp.eq.s32.totalorder %s24, 0
      %p108 = por %p106, %p107
      %p109 = scmp.ne.s32.totalorder %s97, %s98
      %p110 = scmp.eq.s32.totalorder %s25, 1
      %p111 = por %p109, %p110
      %p113 = scmp.ne.s32.totalorder %s98, %s112
      %p114 = scmp.eq.s32.totalorder %s25, 0
      %p115 = por %p113, %p114
      %s117 = sadd.s32 %s116, 1
      %p120 = scmp.eq.s32.totalorder %s19, 1
      %p121 = scmp.ne.s32.totalorder %s116, %s118
      %p122 = scmp.eq.s32.totalorder %s19, 0
      %p123 = por %p121, %p122
      %p124 = scmp.ne.s32.totalorder %s116, %s118
      %p125 = scmp.eq.s32.totalorder %s24, 1
      %p126 = por %p124, %p125
      %p127 = scmp.ne.s32.totalorder %s118, %s119
      %p128 = scmp.eq.s32.totalorder %s24, 0
      %p129 = por %p127, %p128
      %p130 = scmp.ne.s32.totalorder %s118, %s119
      %p131 = scmp.eq.s32.totalorder %s25, 1
      %p132 = por %p130, %p131
      %p134 = scmp.ne.s32.totalorder %s119, %s133
      %p135 = scmp.eq.s32.totalorder %s25, 0
      %p136 = por %p134, %p135
      %s137 = ssub.s32 %s19, %s26
      %p138 = scmp.eq.s32.totalorder %s137, 0
      %s140 = sadd.s32 %s139, 1
      %s141 = scalar_select %p138, %s139, %s140
      %p144 = pneg %p138
      %p145 = scmp.eq.s32.totalorder %s19, 1
      %p146 = por %p144, %p145
      %p147 = scmp.ne.s32.totalorder %s139, %s142
      %p148 = scmp.eq.s32.totalorder %s19, 0
      %p149 = por %p147, %p148
      %p150 = scmp.ne.s32.totalorder %s139, %s142
      %p151 = scmp.eq.s32.totalorder %s24, 1
      %p152 = por %p150, %p151
      %p153 = scmp.ne.s32.totalorder %s142, %s143
      %p154 = scmp.eq.s32.totalorder %s24, 0
      %p155 = por %p153, %p154
      %p156 = scmp.ne.s32.totalorder %s142, %s143
      %p157 = scmp.eq.s32.totalorder %s25, 1
      %p158 = por %p156, %p157
      %p160 = scmp.ne.s32.totalorder %s143, %s159
      %p161 = scmp.eq.s32.totalorder %s25, 0
      %p162 = por %p160, %p161
      %s163 = ssub.s32 %s19, %s26
      %p164 = scmp.eq.s32.totalorder %s163, 0
      %s166 = sadd.s32 %s165, 1
      %s167 = scalar_select %p164, %s165, %s166
      %p170 = pneg %p164
      %p171 = scmp.eq.s32.totalorder %s19, 1
      %p172 = por %p170, %p171
      %p173 = scmp.ne.s32.totalorder %s165, %s168
      %p174 = scmp.eq.s32.totalorder %s19, 0
      %p175 = por %p173, %p174
      %p176 = scmp.ne.s32.totalorder %s165, %s168
      %p177 = scmp.eq.s32.totalorder %s24, 1
      %p178 = por %p176, %p177
      %p179 = scmp.ne.s32.totalorder %s168, %s169
      %p180 = scmp.eq.s32.totalorder %s24, 0
      %p181 = por %p179, %p180
      %p182 = scmp.ne.s32.totalorder %s168, %s169
      %p183 = scmp.eq.s32.totalorder %s25, 1
      %p184 = por %p182, %p183
      %p186 = scmp.ne.s32.totalorder %s169, %s185
      %p187 = scmp.eq.s32.totalorder %s25, 0
      %p188 = por %p186, %p187
      %p189 = scmp.le.s32.totalorder 1, %s19
      %p190 = scmp.lt.s32.totalorder %s19, 3
      %p191 = pnand %p189, %p190
      %p192 = pneg %p191
      // Predicated region
      $region9: #{baseline_train_forward.1} parent=5 // pred_check
        _
      $region10: #{baseline_train_forward.1} parent=5 // pred_check_branch
        %194 = sbr.rel (%p191) target = $region12
      $region11: #{baseline_train_forward.1} parent=5 // pred_region
        %s195 = ssub.s32 %s19, 1
        // Predicated region
        $region13: #{baseline_train_forward.1} parent=11 // pred_check
          %p196 = pneg %p66
        $region14: #{baseline_train_forward.1} parent=11 // pred_check_branch
          %198 = sbr.rel (%p196) target = $region16
        $region15: #{baseline_train_forward.1} parent=11 // pred_region
          _
        $region16: #{baseline_train_forward.1} parent=11 // pred_fallthru
          _
        // Predicated region
        $region17: #{baseline_train_forward.1} parent=11 // pred_check
          %p199 = pneg %p87
        $region18: #{baseline_train_forward.1} parent=11 // pred_check_branch
          %201 = sbr.rel (%p199) target = $region20
        $region19: #{baseline_train_forward.1} parent=11 // pred_region
          _
        $region20: #{baseline_train_forward.1} parent=11 // pred_fallthru
          _
        // Predicated region
        $region21: #{baseline_train_forward.1} parent=11 // pred_check
          %p202 = pneg %p108
        $region22: #{baseline_train_forward.1} parent=11 // pred_check_branch
          %204 = sbr.rel (%p202) target = $region24
        $region23: #{baseline_train_forward.1} parent=11 // pred_region
          _
        $region24: #{baseline_train_forward.1} parent=11 // pred_fallthru
          _
        // Predicated region
        $region25: #{baseline_train_forward.1} parent=11 // pred_check
          %p205 = pneg %p129
        $region26: #{baseline_train_forward.1} parent=11 // pred_check_branch
          %207 = sbr.rel (%p205) target = $region28
        $region27: #{baseline_train_forward.1} parent=11 // pred_region
          _
        $region28: #{baseline_train_forward.1} parent=11 // pred_fallthru
          _
      $region12: #{baseline_train_forward.1} parent=5 // pred_fallthru
        _
      %p208 = scmp.lt.s32.totalorder %s19, 2
      // Predicated region
      $region29: #{baseline_train_forward.1} parent=5 // pred_check
        %p209 = pneg %p208
      $region30: #{baseline_train_forward.1} parent=5 // pred_check_branch
        %211 = sbr.rel (%p209) target = $region32
      $region31: #{baseline_train_forward.1} parent=5 // pred_region
        // Predicated region
        $region33: #{baseline_train_forward.1} parent=31 // pred_check
          %p212 = pneg %p39
        $region34: #{baseline_train_forward.1} parent=31 // pred_check_branch
          %214 = sbr.rel (%p212) target = $region36
        $region35: #{baseline_train_forward.1} parent=31 // pred_region
          %p215 = scmp.lt.s32.totalorder %s19, 1
          %s216 = scalar_select %p215, %s19, 1
          %s217 = smul.addr %s216, 32
          %s218 = smul.addr %s217, 4
          %s219 = scalar_lea.vmem %s0, %s218
        $region36: #{baseline_train_forward.1} parent=31 // pred_fallthru
          _
      $region32: #{baseline_train_forward.1} parent=5 // pred_fallthru
        _
      %p220 = scmp.le.s32.totalorder 1, %s19
      %p221 = scmp.lt.s32.totalorder %s19, 3
      %p222 = pnand %p220, %p221
      %p223 = pneg %p222
      // Predicated region
      $region37: #{baseline_train_forward.1} parent=5 // pred_check
        _
      $region38: #{baseline_train_forward.1} parent=5 // pred_check_branch
        %225 = sbr.rel (%p222) target = $region40
      $region39: #{baseline_train_forward.1} parent=5 // pred_region
        %s226 = ssub.s32 %s19, 1
        %p227 = scmp.lt.s32.totalorder %s24, 1
        %s228 = scalar_select %p227, %s24, 1
        %s229 = smul.addr %s228, 32
        %s230 = smul.addr %s229, 4
        %s231 = scalar_lea.vmem %s0, %s230
        %p232 = pneg %p45
        %p233 = pneg %p42
        %p234 = pneg %p66
        %p235 = pneg %p63
        %p236 = pneg %p87
        %p237 = pneg %p84
        %p238 = pneg %p108
        %p239 = pneg %p105
        %p240 = pneg %p129
        %p241 = pneg %p126
        %p242 = pneg %p155
        %p243 = pneg %p152
        %s244 = sand.u32 %s142, 1
        %s245 = scalar_lea.sflag [#allocation3], %s244
        %s246 = sand.u32 %s142, 1
        %s247 = scalar_lea.vmem [#allocation2], %s246
        %p248 = pneg %p181
        %p249 = pneg %p178
        %s250 = sand.u32 %s168, 1
        %s251 = scalar_lea.sflag [#allocation5], %s250
        %s252 = sand.u32 %s168, 1
        %s253 = scalar_lea.vmem [#allocation4], %s252
        %p254 = scmp.lt.s32.totalorder %s24, 1
        %s255 = scalar_select %p254, %s24, 1
        %s256 = smul.addr %s255, 32
        %s257 = smul.addr %s256, 4
        %s258 = scalar_lea.vmem %s0, %s257
        %v260 = vld [vmem:[%s258] sm:$0xf]
        %v261 = vld [vmem:[%s258 + $0x4] sm:$0xf]
        %v262 = vld [vmem:[%s258 + $0x8] sm:$0xf]
        %v263 = vld [vmem:[%s258 + $0xc] sm:$0xf]
        %v264 = vld [vmem:[%s258 + $0x10] sm:$0xf]
        %v265 = vld [vmem:[%s258 + $0x14] sm:$0xf]
        %v266 = vld [vmem:[%s258 + $0x18] sm:$0xf]
        %v267 = vld [vmem:[%s258 + $0x1c] sm:$0xf]
        %v268 = vld [vmem:[%s258 + $0x20] sm:$0xf]
        %v269 = vld [vmem:[%s258 + $0x24] sm:$0xf]
        %v270 = vld [vmem:[%s258 + $0x28] sm:$0xf]
        %v271 = vld [vmem:[%s258 + $0x2c] sm:$0xf]
        %v272 = vld [vmem:[%s258 + $0x30] sm:$0xf]
        %v273 = vld [vmem:[%s258 + $0x34] sm:$0xf]
        %v274 = vld [vmem:[%s258 + $0x38] sm:$0xf]
        %v275 = vld [vmem:[%s258 + $0x3c] sm:$0xf]
        %v276 = vld [vmem:[%s258 + $0x40] sm:$0xf]
        %v277 = vld [vmem:[%s258 + $0x44] sm:$0xf]
        %v278 = vld [vmem:[%s258 + $0x48] sm:$0xf]
        %v279 = vld [vmem:[%s258 + $0x4c] sm:$0xf]
        %v280 = vld [vmem:[%s258 + $0x50] sm:$0xf]
        %v281 = vld [vmem:[%s258 + $0x54] sm:$0xf]
        %v282 = vld [vmem:[%s258 + $0x58] sm:$0xf]
        %v283 = vld [vmem:[%s258 + $0x5c] sm:$0xf]
        %v284 = vld [vmem:[%s258 + $0x60] sm:$0xf]
        %v285 = vld [vmem:[%s258 + $0x64] sm:$0xf]
        %v286 = vld [vmem:[%s258 + $0x68] sm:$0xf]
        %v287 = vld [vmem:[%s258 + $0x6c] sm:$0xf]
        %v288 = vld [vmem:[%s258 + $0x70] sm:$0xf]
        %v289 = vld [vmem:[%s258 + $0x74] sm:$0xf]
        %v290 = vld [vmem:[%s258 + $0x78] sm:$0xf]
        %v291 = vld [vmem:[%s258 + $0x7c] sm:$0xf]
        %v292 = vld [vmem:[%s1] sm:$0xf]
        %v293 = vld [vmem:[%s1 + $0x4] sm:$0xf]
        %v294 = vld [vmem:[%s1 + $0x8] sm:$0xf]
        %v295 = vld [vmem:[%s1 + $0xc] sm:$0xf]
        %v296 = vld [vmem:[%s1 + $0x10] sm:$0x3]
        %v297 = vld [vmem:[%s2] sm:$0x1]
        %v299 = vlaneseq
        %v300 = vshrl.u32 %v299, 7
        %v301 = vsub.s32 0, %v300
        %v302 = vrot.slane %v297, %v301
        %v336 = vunpack.c.l.b16 %v260
        %v337 = vunpack.c.l.b16 %v261
        %v338 = vunpack.c.l.b16 %v262
        %v339 = vunpack.c.l.b16 %v263
        %v340 = vunpack.c.l.b16 %v264
        %v341 = vunpack.c.l.b16 %v265
        %v342 = vunpack.c.l.b16 %v266
        %v343 = vunpack.c.l.b16 %v267
        %v344 = vunpack.c.l.b16 %v268
        %v345 = vunpack.c.l.b16 %v269
        %v346 = vunpack.c.l.b16 %v270
        %v347 = vunpack.c.l.b16 %v271
        %v348 = vunpack.c.l.b16 %v272
        %v349 = vunpack.c.l.b16 %v273
        %v350 = vunpack.c.l.b16 %v274
        %v351 = vunpack.c.l.b16 %v275
        %v352 = vunpack.c.l.b16 %v276
        %v353 = vunpack.c.l.b16 %v277
        %v354 = vunpack.c.l.b16 %v278
        %v355 = vunpack.c.l.b16 %v279
        %v356 = vunpack.c.l.b16 %v280
        %v357 = vunpack.c.l.b16 %v281
        %v358 = vunpack.c.l.b16 %v282
        %v359 = vunpack.c.l.b16 %v283
        %v360 = vunpack.c.l.b16 %v284
        %v361 = vunpack.c.l.b16 %v285
        %v362 = vunpack.c.l.b16 %v286
        %v363 = vunpack.c.l.b16 %v287
        %v364 = vunpack.c.l.b16 %v288
        %v365 = vunpack.c.l.b16 %v289
        %v366 = vunpack.c.l.b16 %v290
        %v367 = vunpack.c.l.b16 %v291
        %v368 = vpack.c.b16 %v337, %v336
        %v369 = vpack.c.b16 %v339, %v338
        %v370 = vpack.c.b16 %v341, %v340
        %v371 = vpack.c.b16 %v343, %v342
        %v372 = vpack.c.b16 %v345, %v344
        %v373 = vpack.c.b16 %v347, %v346
        %v374 = vpack.c.b16 %v349, %v348
        %v375 = vpack.c.b16 %v351, %v350
        %v376 = vpack.c.b16 %v353, %v352
        %v377 = vpack.c.b16 %v355, %v354
        %v378 = vpack.c.b16 %v357, %v356
        %v379 = vpack.c.b16 %v359, %v358
        %v380 = vpack.c.b16 %v361, %v360
        %v381 = vpack.c.b16 %v363, %v362
        %v382 = vpack.c.b16 %v365, %v364
        %v383 = vpack.c.b16 %v367, %v366
        %v389 = vunpack.c.l.b16 %v292
        %v390 = vunpack.c.l.b16 %v293
        %v391 = vunpack.c.l.b16 %v294
        %v392 = vunpack.c.l.b16 %v295
        %v393 = vunpack.c.l.b16 %v296
        %v394 = vpack.c.b16 %v390, %v389
        %v395 = vpack.c.b16 %v392, %v391
        %v396 = vpack.c.b16 %v393, %v393
        %vm399 = vcmask 293888
        %v401 = vsel %vm399, %v368, 0
        %v404 = vsel %vm399, %v369, 0
        %v407 = vsel %vm399, %v370, 0
        %v410 = vsel %vm399, %v371, 0
        %v413 = vsel %vm399, %v372, 0
        %v416 = vsel %vm399, %v373, 0
        %v419 = vsel %vm399, %v374, 0
        %v422 = vsel %vm399, %v375, 0
        %v425 = vsel %vm399, %v376, 0
        %v428 = vsel %vm399, %v377, 0
        %v431 = vsel %vm399, %v378, 0
        %v434 = vsel %vm399, %v379, 0
        %v437 = vsel %vm399, %v380, 0
        %v440 = vsel %vm399, %v381, 0
        %v443 = vsel %vm399, %v382, 0
        %v446 = vsel %vm399, %v383, 0
        %vm448 = vcmask 1041408
        %v450 = vsel %vm448, %v396, 0
        %452 = vmatprep.subr.bf16.mxu0 0
        %453 = vmatpush1.bf16.msra.mxu0 %v394
        %454 = vmatprep.subr.bf16.mxu0 0
        %455 = vmatpush1.bf16.msra.mxu0 %v395
        %456 = vmatprep.subr.bf16.mxu0 0
        %457 = vmatpush1.bf16.msra.mxu0 %v450
        %458 = vmatprep.subr.bf16.mxu0 0
        %459 = vmatpush1.bf16.msra.mxu0 0
        %460 = vmatprep.subr.bf16.mxu0 0
        %461 = vmatpush1.bf16.msra.mxu0 0
        %462 = vmatprep.subr.bf16.mxu0 0
        %463 = vmatpush1.bf16.msra.mxu0 0
        %464 = vmatprep.subr.bf16.mxu0 0
        %465 = vmatpush1.bf16.msra.mxu0 0
        %466 = vmatprep.subr.bf16.mxu0 0
        %467 = vmatpush1.bf16.msra.mxu0 0
        %468 = vmatprep.subr.bf16.mxu0 0
        %469 = vmatpush1.bf16.msra.mxu0 0
        %470 = vmatprep.subr.bf16.mxu0 0
        %471 = vmatpush1.bf16.msra.mxu0 0
        %472 = vmatprep.subr.bf16.mxu0 0
        %473 = vmatpush1.bf16.msra.mxu0 0
        %474 = vmatprep.subr.bf16.mxu0 0
        %475 = vmatpush1.bf16.msra.mxu0 0
        %476 = vmatprep.subr.bf16.mxu0 0
        %477 = vmatpush1.bf16.msra.mxu0 0
        %478 = vmatprep.subr.bf16.mxu0 0
        %479 = vmatpush1.bf16.msra.mxu0 0
        %480 = vmatprep.subr.bf16.mxu0 0
        %481 = vmatpush1.bf16.msra.mxu0 0
        %482 = vmatprep.subr.bf16.mxu0 0
        %483 = vmatpush1.bf16.msra.mxu0 0
        %484 = vmatprep.mubr.bf16.mxu0 0
        %485 = vmatmul.mubr.bf16.gmra.mrb[0].mxu0 %v401
        %v486 = vpop.f32.mrb[0].mxu0
        %v487 = vadd.f32 %v302, %v486
        %v488 = vpop.f32.mrb[0].mxu0
        %v489 = vpop.f32.mrb[0].mxu0
        %v490 = vadd.f32 %v302, %v489
        %v491 = vpop.f32.mrb[0].mxu0
        %492 = vmatprep.mubr.bf16.mxu0 0
        %493 = vmatmul.mubr.bf16.gmra.mrb[0].mxu0 %v404
        %v494 = vpop.f32.mrb[0].mxu0
        %v495 = vadd.f32 %v302, %v494
        %v496 = vpop.f32.mrb[0].mxu0
        %v497 = vpop.f32.mrb[0].mxu0
        %v498 = vadd.f32 %v302, %v497
        %v499 = vpop.f32.mrb[0].mxu0
        %500 = vmatprep.mubr.bf16.mxu0 0
        %501 = vmatmul.mubr.bf16.gmra.mrb[0].mxu0 %v407
        %v502 = vpop.f32.mrb[0].mxu0
        %v503 = vadd.f32 %v302, %v502
        %v504 = vpop.f32.mrb[0].mxu0
        %v505 = vpop.f32.mrb[0].mxu0
        %v506 = vadd.f32 %v302, %v505
        %v507 = vpop.f32.mrb[0].mxu0
        %508 = vmatprep.mubr.bf16.mxu0 0
        %509 = vmatmul.mubr.bf16.gmra.mrb[0].mxu0 %v410
        %v510 = vpop.f32.mrb[0].mxu0
        %v511 = vadd.f32 %v302, %v510
        %v512 = vpop.f32.mrb[0].mxu0
        %v513 = vpop.f32.mrb[0].mxu0
        %v514 = vadd.f32 %v302, %v513
        %v515 = vpop.f32.mrb[0].mxu0
        %516 = vmatprep.mubr.bf16.mxu0 0
        %517 = vmatmul.mubr.bf16.gmra.mrb[0].mxu0 %v413
        %v518 = vpop.f32.mrb[0].mxu0
        %v519 = vadd.f32 %v302, %v518
        %v520 = vpop.f32.mrb[0].mxu0
        %v521 = vpop.f32.mrb[0].mxu0
        %v522 = vadd.f32 %v302, %v521
        %v523 = vpop.f32.mrb[0].mxu0
        %524 = vmatprep.mubr.bf16.mxu0 0
        %525 = vmatmul.mubr.bf16.gmra.mrb[0].mxu0 %v416
        %v526 = vpop.f32.mrb[0].mxu0
        %v527 = vadd.f32 %v302, %v526
        %v528 = vpop.f32.mrb[0].mxu0
        %v529 = vpop.f32.mrb[0].mxu0
        %v530 = vadd.f32 %v302, %v529
        %v531 = vpop.f32.mrb[0].mxu0
        %532 = vmatprep.mubr.bf16.mxu0 0
        %533 = vmatmul.mubr.bf16.gmra.mrb[0].mxu0 %v419
        %v534 = vpop.f32.mrb[0].mxu0
        %v535 = vadd.f32 %v302, %v534
        %v536 = vpop.f32.mrb[0].mxu0
        %v537 = vpop.f32.mrb[0].mxu0
        %v538 = vadd.f32 %v302, %v537
        %v539 = vpop.f32.mrb[0].mxu0
        %540 = vmatprep.mubr.bf16.mxu0 0
        %541 = vmatmul.mubr.bf16.gmra.mrb[0].mxu0 %v422
        %v542 = vpop.f32.mrb[0].mxu0
        %v543 = vadd.f32 %v302, %v542
        %v544 = vpop.f32.mrb[0].mxu0
        %v545 = vpop.f32.mrb[0].mxu0
        %v546 = vadd.f32 %v302, %v545
        %v547 = vpop.f32.mrb[0].mxu0
        %548 = vmatprep.mubr.bf16.mxu0 0
        %549 = vmatmul.mubr.bf16.gmra.mrb[0].mxu0 %v425
        %v550 = vpop.f32.mrb[0].mxu0
        %v551 = vadd.f32 %v302, %v550
        %v552 = vpop.f32.mrb[0].mxu0
        %v553 = vpop.f32.mrb[0].mxu0
        %v554 = vadd.f32 %v302, %v553
        %v555 = vpop.f32.mrb[0].mxu0
        %556 = vmatprep.mubr.bf16.mxu0 0
        %557 = vmatmul.mubr.bf16.gmra.mrb[0].mxu0 %v428
        %v558 = vpop.f32.mrb[0].mxu0
        %v559 = vadd.f32 %v302, %v558
        %v560 = vpop.f32.mrb[0].mxu0
        %v561 = vpop.f32.mrb[0].mxu0
        %v562 = vadd.f32 %v302, %v561
        %v563 = vpop.f32.mrb[0].mxu0
        %564 = vmatprep.mubr.bf16.mxu0 0
        %565 = vmatmul.mubr.bf16.gmra.mrb[0].mxu0 %v431
        %v566 = vpop.f32.mrb[0].mxu0
        %v567 = vadd.f32 %v302, %v566
        %v568 = vpop.f32.mrb[0].mxu0
        %v569 = vpop.f32.mrb[0].mxu0
        %v570 = vadd.f32 %v302, %v569
        %v571 = vpop.f32.mrb[0].mxu0
        %572 = vmatprep.mubr.bf16.mxu0 0
        %573 = vmatmul.mubr.bf16.gmra.mrb[0].mxu0 %v434
        %v574 = vpop.f32.mrb[0].mxu0
        %v575 = vadd.f32 %v302, %v574
        %v576 = vpop.f32.mrb[0].mxu0
        %v577 = vpop.f32.mrb[0].mxu0
        %v578 = vadd.f32 %v302, %v577
        %v579 = vpop.f32.mrb[0].mxu0
        %580 = vmatprep.mubr.bf16.mxu0 0
        %581 = vmatmul.mubr.bf16.gmra.mrb[0].mxu0 %v437
        %v582 = vpop.f32.mrb[0].mxu0
        %v583 = vadd.f32 %v302, %v582
        %v584 = vpop.f32.mrb[0].mxu0
        %v585 = vpop.f32.mrb[0].mxu0
        %v586 = vadd.f32 %v302, %v585
        %v587 = vpop.f32.mrb[0].mxu0
        %588 = vmatprep.mubr.bf16.mxu0 0
        %589 = vmatmul.mubr.bf16.gmra.mrb[0].mxu0 %v440
        %v590 = vpop.f32.mrb[0].mxu0
        %v591 = vadd.f32 %v302, %v590
        %v592 = vpop.f32.mrb[0].mxu0
        %v593 = vpop.f32.mrb[0].mxu0
        %v594 = vadd.f32 %v302, %v593
        %v595 = vpop.f32.mrb[0].mxu0
        %596 = vmatprep.mubr.bf16.mxu0 0
        %597 = vmatmul.mubr.bf16.gmra.mrb[0].mxu0 %v443
        %v598 = vpop.f32.mrb[0].mxu0
        %v599 = vadd.f32 %v302, %v598
        %v600 = vpop.f32.mrb[0].mxu0
        %v601 = vpop.f32.mrb[0].mxu0
        %v602 = vadd.f32 %v302, %v601
        %v603 = vpop.f32.mrb[0].mxu0
        %604 = vmatprep.mubr.bf16.mxu0 0
        %605 = vmatmul.mubr.bf16.gmra.mrb[0].mxu0 %v446
        %v606 = vpop.f32.mrb[0].mxu0
        %v607 = vadd.f32 %v302, %v606
        %v608 = vpop.f32.mrb[0].mxu0
        %v609 = vpop.f32.mrb[0].mxu0
        %v610 = vadd.f32 %v302, %v609
        %v611 = vpop.f32.mrb[0].mxu0
        %612 = vdwg.mxu0
        %v613 = vmax.f32 %v487, 0.0
        %v614 = vmax.f32 %v490, 0.0
        %v615 = vmax.f32 %v495, 0.0
        %v616 = vmax.f32 %v498, 0.0
        %v617 = vmax.f32 %v503, 0.0
        %v618 = vmax.f32 %v506, 0.0
        %v619 = vmax.f32 %v511, 0.0
        %v620 = vmax.f32 %v514, 0.0
        %v621 = vmax.f32 %v519, 0.0
        %v622 = vmax.f32 %v522, 0.0
        %v623 = vmax.f32 %v527, 0.0
        %v624 = vmax.f32 %v530, 0.0
        %v625 = vmax.f32 %v535, 0.0
        %v626 = vmax.f32 %v538, 0.0
        %v627 = vmax.f32 %v543, 0.0
        %v628 = vmax.f32 %v546, 0.0
        %v629 = vmax.f32 %v551, 0.0
        %v630 = vmax.f32 %v554, 0.0
        %v631 = vmax.f32 %v559, 0.0
        %v632 = vmax.f32 %v562, 0.0
        %v633 = vmax.f32 %v567, 0.0
        %v634 = vmax.f32 %v570, 0.0
        %v635 = vmax.f32 %v575, 0.0
        %v636 = vmax.f32 %v578, 0.0
        %v637 = vmax.f32 %v583, 0.0
        %v638 = vmax.f32 %v586, 0.0
        %v639 = vmax.f32 %v591, 0.0
        %v640 = vmax.f32 %v594, 0.0
        %v641 = vmax.f32 %v599, 0.0
        %v642 = vmax.f32 %v602, 0.0
        %v643 = vmax.f32 %v607, 0.0
        %v644 = vmax.f32 %v610, 0.0
        %v645 = vadd.f32 %v613, %v614
        %v646 = vadd.f32 %v645, %v615
        %v647 = vadd.f32 %v646, %v616
        %v648 = vadd.f32 %v647, %v617
        %v649 = vadd.f32 %v648, %v618
        %v650 = vadd.f32 %v649, %v619
        %v651 = vadd.f32 %v650, %v620
        %v652 = vadd.f32 %v651, %v621
        %v653 = vadd.f32 %v652, %v622
        %v654 = vadd.f32 %v653, %v623
        %v655 = vadd.f32 %v654, %v624
        %v656 = vadd.f32 %v655, %v625
        %v657 = vadd.f32 %v656, %v626
        %v658 = vadd.f32 %v657, %v627
        %v659 = vadd.f32 %v658, %v628
        %v660 = vadd.f32 %v659, %v629
        %v661 = vadd.f32 %v660, %v630
        %v662 = vadd.f32 %v661, %v631
        %v663 = vadd.f32 %v662, %v632
        %v664 = vadd.f32 %v663, %v633
        %v665 = vadd.f32 %v664, %v634
        %v666 = vadd.f32 %v665, %v635
        %v667 = vadd.f32 %v666, %v636
        %v668 = vadd.f32 %v667, %v637
        %v669 = vadd.f32 %v668, %v638
        %v670 = vadd.f32 %v669, %v639
        %v671 = vadd.f32 %v670, %v640
        %v672 = vadd.f32 %v671, %v641
        %v673 = vadd.f32 %v672, %v642
        %v674 = vadd.f32 %v673, %v643
        %v675 = vadd.f32 %v674, %v644
        %v676 = vrot.slane %v675, 4
        %v677 = vadd.f32 %v675, %v676
        %v678 = vrot.slane %v677, 2
        %v679 = vadd.f32 %v677, %v678
        %v680 = vrot.slane %v679, 1
        %v681 = vadd.f32 %v679, %v680
        %v682 = vmul.f32 %v681, 0.00390625
        %683 = vst [vmem:[%s247] sm:$0x1] %v682
        %v684 = vld [vmem:[%s3] sm:$0xff]
        %v685 = vld [vmem:[%s3 + $0x8] sm:$0xff]
        %v686 = vld [vmem:[%s3 + $0x10] sm:$0xff]
        %v687 = vld [vmem:[%s3 + $0x18] sm:$0xff]
        %v688 = vld [vmem:[%s3 + $0x20] sm:$0xff]
        %v689 = vld [vmem:[%s3 + $0x28] sm:$0xff]
        %v690 = vld [vmem:[%s3 + $0x30] sm:$0xff]
        %v691 = vld [vmem:[%s3 + $0x38] sm:$0xff]
        %v692 = vld [vmem:[%s3 + $0x40] sm:$0xff]
        %v693 = vld [vmem:[%s3 + $0x48] sm:$0xff]
        %v694 = vld [vmem:[%s3 + $0x50] sm:$0xff]
        %v695 = vld [vmem:[%s3 + $0x58] sm:$0xff]
        %v696 = vld [vmem:[%s3 + $0x60] sm:$0xff]
        %v697 = vld [vmem:[%s3 + $0x68] sm:$0xff]
        %v698 = vld [vmem:[%s3 + $0x70] sm:$0xff]
        %v699 = vld [vmem:[%s3 + $0x78] sm:$0xff]
        %v700 = vld [vmem:[%s4] sm:$0x1]
        %701 = vmatprep.subr.mxu0 0.0
        %702 = vmatpush1.msra.mxu0 %v684
        %703 = vmatprep.subr.mxu0 0.0
        %704 = vmatpush1.msra.mxu0 %v685
        %705 = vmatprep.subr.mxu0 0.0
        %706 = vmatpush1.msra.mxu0 %v686
        %707 = vmatprep.subr.mxu0 0.0
        %708 = vmatpush1.msra.mxu0 %v687
        %709 = vmatprep.subr.mxu0 0.0
        %710 = vmatpush1.msra.mxu0 %v688
        %711 = vmatprep.subr.mxu0 0.0
        %712 = vmatpush1.msra.mxu0 %v689
        %713 = vmatprep.subr.mxu0 0.0
        %714 = vmatpush1.msra.mxu0 %v690
        %715 = vmatprep.subr.mxu0 0.0
        %716 = vmatpush1.msra.mxu0 %v691
        %717 = vmatprep.subr.mxu0 0.0
        %718 = vmatpush1.msra.mxu0 %v692
        %719 = vmatprep.subr.mxu0 0.0
        %720 = vmatpush1.msra.mxu0 %v693
        %721 = vmatprep.subr.mxu0 0.0
        %722 = vmatpush1.msra.mxu0 %v694
        %723 = vmatprep.subr.mxu0 0.0
        %724 = vmatpush1.msra.mxu0 %v695
        %725 = vmatprep.subr.mxu0 0.0
        %726 = vmatpush1.msra.mxu0 %v696
        %727 = vmatprep.subr.mxu0 0.0
        %728 = vmatpush1.msra.mxu0 %v697
        %729 = vmatprep.subr.mxu0 0.0
        %730 = vmatpush1.msra.mxu0 %v698
        %731 = vmatprep.subr.mxu0 0.0
        %732 = vmatpush1.msra.mxu0 %v699
        %733 = vmatprep.subr.mxu0 0.0
        %734 = vmatpush1.msra.mxu0 0.0
        %735 = vmatprep.subr.mxu0 0.0
        %736 = vmatpush1.msra.mxu0 0.0
        %737 = vmatprep.subr.mxu0 0.0
        %738 = vmatpush1.msra.mxu0 0.0
        %739 = vmatprep.subr.mxu0 0.0
        %740 = vmatpush1.msra.mxu0 0.0
        %741 = vmatprep.subr.mxu0 0.0
        %742 = vmatpush1.msra.mxu0 0.0
        %743 = vmatprep.subr.mxu0 0.0
        %744 = vmatpush1.msra.mxu0 0.0
        %745 = vmatprep.subr.mxu0 0.0
        %746 = vmatpush1.msra.mxu0 0.0
        %747 = vmatprep.subr.mxu0 0.0
        %748 = vmatpush1.msra.mxu0 0.0
        %749 = vmatprep.subr.mxu0 0.0
        %750 = vmatpush1.msra.mxu0 0.0
        %751 = vmatprep.subr.mxu0 0.0
        %752 = vmatpush1.msra.mxu0 0.0
        %753 = vmatprep.subr.mxu0 0.0
        %754 = vmatpush1.msra.mxu0 0.0
        %755 = vmatprep.subr.mxu0 0.0
        %756 = vmatpush1.msra.mxu0 0.0
        %757 = vmatprep.subr.mxu0 0.0
        %758 = vmatpush1.msra.mxu0 0.0
        %759 = vmatprep.subr.mxu0 0.0
        %760 = vmatpush1.msra.mxu0 0.0
        %761 = vmatprep.subr.mxu0 0.0
        %762 = vmatpush1.msra.mxu0 0.0
        %763 = vmatprep.subr.mxu0 0.0
        %764 = vmatpush1.msra.mxu0 0.0
        %765 = vmatprep.mubr.f32.mxu0 0.0
        %766 = vmatmul.mubr.f32.gmra.mrb[0].mxu0 %v682
        %v767 = vpop.f32.mrb[0].mxu0
        %v768 = vadd.f32 %v700, %v767
        %v769 = vpop.f32.mrb[0].mxu0
        %770 = vdwg.mxu0
        %771 = vst [vmem:[%s253] sm:$0x1] %v768
        %s772 = sand.u32 %s142, 1
        %s773 = scalar_lea.sflag [#allocation3], %s772
        %s774 = sand.u32 %s142, 1
        %s775 = scalar_lea.vmem [#allocation2], %s774
        %s776 = sand.u32 %s168, 1
        %s777 = scalar_lea.sflag [#allocation5], %s776
        %s778 = sand.u32 %s168, 1
        %s779 = scalar_lea.vmem [#allocation4], %s778
        // Predicated region
        $region41: #{baseline_train_forward.1} parent=39 // pred_check
          %p780 = pneg %p152
        $region42: #{baseline_train_forward.1} parent=39 // pred_check_branch
          %782 = sbr.rel (%p780) target = $region44
        $region43: #{baseline_train_forward.1} parent=39 // pred_region
          %s784 = ssub.s32 16, 16
          %785 = vsyncadd %s773, %s784
          %s786 = smul.addr %s24, 16
          %s787 = scalar_lea.hbm %s5, %s786
          %s789 = sshll.u32 %s775, 4
          %s790 = int_to_ptr.vmem [resolvable:$true] %s789
          %792 = dma.vmem_to_hbm [thread:$0]  %s790, 16, %s787, %s773
        $region44: #{baseline_train_forward.1} parent=39 // pred_fallthru
          _
        // Predicated region
        $region45: #{baseline_train_forward.1} parent=39 // pred_check
          %p793 = pneg %p178
        $region46: #{baseline_train_forward.1} parent=39 // pred_check_branch
          %795 = sbr.rel (%p793) target = $region48
        $region47: #{baseline_train_forward.1} parent=39 // pred_region
          %s797 = ssub.s32 16, 16
          %798 = vsyncadd %s777, %s797
          %s799 = smul.addr %s24, 16
          %s800 = scalar_lea.hbm %s6, %s799
          %s802 = sshll.u32 %s779, 4
          %s803 = int_to_ptr.vmem [resolvable:$true] %s802
          %805 = dma.vmem_to_hbm [thread:$0]  %s803, 16, %s800, %s777
        $region48: #{baseline_train_forward.1} parent=39 // pred_fallthru
          _
      $region40: #{baseline_train_forward.1} parent=5 // pred_fallthru
        _
      %p806 = scmp.le.s32.totalorder 2, %s19
      // Predicated region
      $region49: #{baseline_train_forward.1} parent=5 // pred_check
        %p807 = pneg %p806
      $region50: #{baseline_train_forward.1} parent=5 // pred_check_branch
        %809 = sbr.rel (%p807) target = $region52
      $region51: #{baseline_train_forward.1} parent=5 // pred_region
        %s810 = ssub.s32 %s19, 2
        // Predicated region
        $region53: #{baseline_train_forward.1} parent=51 // pred_check
          %p811 = pneg %p158
        $region54: #{baseline_train_forward.1} parent=51 // pred_check_branch
          %813 = sbr.rel (%p811) target = $region56
        $region55: #{baseline_train_forward.1} parent=51 // pred_region
          %s814 = sand.u32 %s143, 1
          %s815 = scalar_lea.sflag [#allocation3], %s814
          %s816 = sand.u32 %s143, 1
          %s817 = scalar_lea.vmem [#allocation2], %s816
          %818 = dma.done %s815, 16
        $region56: #{baseline_train_forward.1} parent=51 // pred_fallthru
          _
        // Predicated region
        $region57: #{baseline_train_forward.1} parent=51 // pred_check
          %p819 = pneg %p184
        $region58: #{baseline_train_forward.1} parent=51 // pred_check_branch
          %821 = sbr.rel (%p819) target = $region60
        $region59: #{baseline_train_forward.1} parent=51 // pred_region
          %s822 = sand.u32 %s169, 1
          %s823 = scalar_lea.sflag [#allocation5], %s822
          %s824 = sand.u32 %s169, 1
          %s825 = scalar_lea.vmem [#allocation4], %s824
          %826 = dma.done %s823, 16
        $region60: #{baseline_train_forward.1} parent=51 // pred_fallthru
          _
      $region52: #{baseline_train_forward.1} parent=5 // pred_fallthru
        _
    $region6: #{baseline_train_forward.1} parent=1 // loop_footer
      %s23 = sadd.s32 1, %s19
    $region7: #{baseline_train_forward.1} parent=1 // loop_footer_branch
      %18 = sbr.rel target = $region3
    $region8: #{baseline_train_forward.1} parent=1 // loop_exit
      _
    %827 = vsyncpa [#allocation3], 1
    %s828 = scalar_lea.sflag [#allocation3], 1
    %829 = vsyncpa %s828, 1
    %830 = vsyncpa [#allocation5], 1
    %s831 = scalar_lea.sflag [#allocation5], 1
    %832 = vsyncpa %s831, 1

</llo_original>
